<compile_context>
chip_gen: v7x
topology: tpu7x:2x2x1
jax: 0.10.0
libtpu: 0.0.40
codegen_flags: <defaults>
</compile_context>

<pallas_src>
import functools

import jax
import jax.numpy as jnp
from jax.experimental import pallas as pl
from jax.experimental.pallas import tpu as pltpu


def _focal_loss_kernel(logits_ref, labels_ref, sum_ref, cnt_ref, *,
                       gamma, ignore_lb, hw, tile_hw):
    t_i = pl.program_id(1)

    # Fresh accumulator rows for every batch item (output block changes with i).
    @pl.when(t_i == 0)
    def _():
        sum_ref[...] = jnp.zeros_like(sum_ref)
        cnt_ref[...] = jnp.zeros_like(cnt_ref)

    x = logits_ref[...].astype(jnp.float32)          # (C, T)  classes on sublanes
    lab = labels_ref[...]                            # (1, T)  int32

    # Numerically-stable softmax statistics over the class (sublane) axis.
    m = jnp.max(x, axis=0, keepdims=True)            # (1, T)
    s = jnp.sum(jnp.exp(x - m), axis=0, keepdims=True)  # (1, T), >= 1

    # Gather the label-class logit via a one-hot sublane select (VPU only).
    cls = jax.lax.broadcasted_iota(jnp.int32, x.shape, 0)
    onehot = (cls == lab).astype(jnp.float32)        # (C, T)
    x_y = jnp.sum(x * onehot, axis=0, keepdims=True)  # (1, T)

    # Focal term only for the selected class.
    log_p_y = (x_y - m) - jnp.log(s)                 # (1, T)
    p_y = jnp.exp(log_p_y)
    one_minus = jnp.maximum(1.0 - p_y, 0.0)          # clamp: avoid pow(neg, frac)

    g = float(gamma)
    if g == int(g) and 0 <= int(g) <= 8:
        # Integer gamma (e.g. 2.0) -> VPU multiply chain, no EUP transcendentals.
        factor = jnp.ones_like(one_minus)
        for _ in range(int(g)):
            factor = factor * one_minus
    else:
        factor = jnp.power(one_minus, g)
    mod_y = factor * log_p_y                         # (1, T)

    # Validity: not ignore_index, and inside the real pixel range (ragged tail
    # of the last block is masked in-kernel instead of padding in the wrapper).
    valid = lab != ignore_lb                         # (1, T)
    col = t_i * tile_hw + jax.lax.broadcasted_iota(jnp.int32, lab.shape, 1)
    keep = jnp.logical_and(valid, col < hw)          # (1, T)

    # Lane-vector accumulation (no per-step scalar reduction).  jnp.where (not
    # multiply-by-mask) so garbage from an out-of-bounds tail block can't
    # poison the sum with NaNs.
    sum_ref[0:1, :] += jnp.where(keep, -mod_y, 0.0)
    cnt_ref[0:1, :] += keep.astype(jnp.float32)


def softmax_focal_loss(logits, labels, gamma, ignore_lb=255, block_hw=2048):
    """logits: (N, C, H, W); labels: (N, H, W) int. Returns scalar mean loss."""
    n, c, h, w = logits.shape
    hw = h * w

    # Native-layout views (free reshapes, no transpose, no dtype up-cast).
    x3 = logits.reshape(n, c, hw)
    lab3 = labels.reshape(n, 1, hw).astype(jnp.int32)

    # Pick the biggest lane-dense pixel tile that keeps the double-buffered
    # logits block comfortably inside scoped VMEM (v5e default 16 MiB).
    itemsize = jnp.dtype(logits.dtype).itemsize
    vmem_cols = max(128, ((8 << 20) // (2 * c * itemsize)) // 128 * 128)
    block_hw = min(block_hw, vmem_cols)

    if hw <= block_hw:
        tile_hw = hw
        num_t = 1
    else:
        tile_hw = max(128, (block_hw // 128) * 128)
        num_t = pl.cdiv(hw, tile_hw)

    kernel = functools.partial(
        _focal_loss_kernel,
        gamma=float(gamma), ignore_lb=int(ignore_lb),
        hw=hw, tile_hw=tile_hw)

    sums, cnts = pl.pallas_call(
        kernel,
        out_shape=(jax.ShapeDtypeStruct((n, 8, tile_hw), jnp.float32),
                   jax.ShapeDtypeStruct((n, 8, tile_hw), jnp.float32)),
        grid_spec=pltpu.PrefetchScalarGridSpec(
            num_scalar_prefetch=0,
            grid=(n, num_t),
            in_specs=[
                # (C, tile_hw) block: classes on sublanes, pixels on lanes.
                pl.BlockSpec((None, c, tile_hw), lambda i, t: (i, 0, t)),
                pl.BlockSpec((None, 1, tile_hw), lambda i, t: (i, 0, t)),
            ],
            out_specs=(
                pl.BlockSpec((None, 8, tile_hw), lambda i, t: (i, 0, 0)),
                pl.BlockSpec((None, 8, tile_hw), lambda i, t: (i, 0, 0)),
            ),
        ),
        compiler_params=pltpu.CompilerParams(
            dimension_semantics=("parallel", "arbitrary")),
    )(x3, lab3)

    # NLLLoss(reduction='mean', ignore_index=ignore_lb): sum over valid / #valid
    return jnp.sum(sums) / jnp.sum(cnts)


def _reference_loss(logits, labels, gamma, ignore_lb=255):
    """Pure-JAX reference matching the PyTorch forward."""
    log_sm = jax.nn.log_softmax(logits, axis=1)
    sm = jax.nn.softmax(logits, axis=1)
    mod = jnp.power(1.0 - sm, gamma) * log_sm
    valid = labels != ignore_lb
    lab_safe = jnp.where(valid, labels, 0)
    sel = jnp.take_along_axis(mod, lab_safe[:, None, :, :], axis=1)[:, 0]
    return -jnp.sum(jnp.where(valid, sel, 0.0)) / jnp.sum(valid)


if __name__ == "__main__":
    gamma = 2.0
    ignore_lb = 255

    key = jax.random.PRNGKey(0)
    k_logits, k_labels, k_ignore = jax.random.split(key, 3)

    n, c, h, w = 2, 4, 16, 16
    logits = jax.random.normal(k_logits, (n, c, h, w), dtype=jnp.float32)
    labels = jax.random.randint(k_labels, (n, h, w), 0, c, dtype=jnp.int32)
    # Sprinkle some ignored pixels to exercise ignore_index=255.
    ignore_mask = jax.random.uniform(k_ignore, (n, h, w)) < 0.1
    labels = jnp.where(ignore_mask, ignore_lb, labels)

    loss = softmax_focal_loss(logits, labels, gamma, ignore_lb)
    loss = jax.block_until_ready(loss)

    ref = jax.block_until_ready(_reference_loss(logits, labels, gamma, ignore_lb))
    assert jnp.allclose(loss, ref, rtol=1e-4, atol=1e-5), (loss, ref)

    print("KERNEL_OK")
</pallas_src>

<mosaic_0001>
module attributes {stable_mosaic.version = 11 : i64} {
  func.func @_focal_loss_kernel(%arg0: i32, %arg1: i32, %arg2: memref<1x4x256xf32, #tpu.memory_space<vmem>>, %arg3: memref<1x1x256xi32, #tpu.memory_space<vmem>>, %arg4: memref<1x8x256xf32, #tpu.memory_space<vmem>>, %arg5: memref<1x8x256xf32, #tpu.memory_space<vmem>>) attributes {dimension_semantics = [#tpu.dimension_semantics<parallel>, #tpu.dimension_semantics<arbitrary>], iteration_bounds = array<i64: 2, 1>, scalar_prefetch = 0 : i64, scratch_operands = 0 : i64, tpu.core_type = #tpu.core_type<tc>, window_params = [{transform_indices = @transform_0, window_bounds = array<i64: 1, 4, 256>}, {transform_indices = @transform_1, window_bounds = array<i64: 1, 1, 256>}, {transform_indices = @transform_2, window_bounds = array<i64: 1, 8, 256>}, {transform_indices = @transform_3, window_bounds = array<i64: 1, 8, 256>}]} {
    %c0_i32 = arith.constant 0 : i32
    %0 = arith.cmpi eq, %arg1, %c0_i32 : i32
    %1 = arith.extui %0 : i1 to i32
    %c0_i32_0 = arith.constant 0 : i32
    %2 = arith.cmpi ne, %1, %c0_i32_0 : i32
    scf.if %2 {
      %cst_26 = arith.constant 0.000000e+00 : f32
      %61 = vector.broadcast %cst_26 : f32 to vector<8x256xf32>
      %c0_27 = arith.constant 0 : index
      %c0_28 = arith.constant 0 : index
      %c0_29 = arith.constant 0 : index
      %62 = vector.load %arg4[%c0_27, %c0_28, %c0_29] : memref<1x8x256xf32, #tpu.memory_space<vmem>>, vector<1x8x256xf32>
      %63 = vector.shape_cast %62 : vector<1x8x256xf32> to vector<8x256xf32>
      %64 = vector.shape_cast %61 : vector<8x256xf32> to vector<1x8x256xf32>
      tpu.vector_store %arg4[%c0_27, %c0_28, %c0_29], %64 {strides = array<i32>} : memref<1x8x256xf32, #tpu.memory_space<vmem>>, vector<1x8x256xf32>,
      %cst_30 = arith.constant 0.000000e+00 : f32
      %65 = vector.broadcast %cst_30 : f32 to vector<8x256xf32>
      %c0_31 = arith.constant 0 : index
      %c0_32 = arith.constant 0 : index
      %c0_33 = arith.constant 0 : index
      %66 = vector.load %arg5[%c0_31, %c0_32, %c0_33] : memref<1x8x256xf32, #tpu.memory_space<vmem>>, vector<1x8x256xf32>
      %67 = vector.shape_cast %66 : vector<1x8x256xf32> to vector<8x256xf32>
      %68 = vector.shape_cast %65 : vector<8x256xf32> to vector<1x8x256xf32>
      tpu.vector_store %arg5[%c0_31, %c0_32, %c0_33], %68 {strides = array<i32>} : memref<1x8x256xf32, #tpu.memory_space<vmem>>, vector<1x8x256xf32>,
    } else {
    }
    %c0 = arith.constant 0 : index
    %c0_1 = arith.constant 0 : index
    %c0_2 = arith.constant 0 : index
    %3 = vector.load %arg2[%c0, %c0_1, %c0_2] : memref<1x4x256xf32, #tpu.memory_space<vmem>>, vector<1x4x256xf32>
    %4 = vector.shape_cast %3 : vector<1x4x256xf32> to vector<4x256xf32>
    %c0_3 = arith.constant 0 : index
    %c0_4 = arith.constant 0 : index
    %c0_5 = arith.constant 0 : index
    %5 = vector.load %arg3[%c0_3, %c0_4, %c0_5] : memref<1x1x256xi32, #tpu.memory_space<vmem>>, vector<1x1x256xi32>
    %6 = vector.shape_cast %5 : vector<1x1x256xi32> to vector<1x256xi32>
    %cst = arith.constant dense<0xFF800000> : vector<256xf32>
    %7 = vector.multi_reduction <maximumf>, %4, %cst [0] : vector<4x256xf32> to vector<256xf32>
    %8 = vector.shape_cast %7 : vector<256xf32> to vector<1x256xf32>
    %9 = vector.broadcast %8 : vector<1x256xf32> to vector<4x256xf32>
    %10 = arith.subf %4, %9 : vector<4x256xf32>
    %11 = math.exp %10 : vector<4x256xf32>
    %cst_6 = arith.constant dense<0.000000e+00> : vector<256xf32>
    %12 = vector.multi_reduction <add>, %11, %cst_6 [0] : vector<4x256xf32> to vector<256xf32>
    %13 = vector.shape_cast %12 : vector<256xf32> to vector<1x256xf32>
    %14 = tpu.iota {dimensions = array<i32: 0>} : vector<4x256xi32>
    %15 = vector.broadcast %6 : vector<1x256xi32> to vector<4x256xi32>
    %16 = arith.cmpi eq, %14, %15 : vector<4x256xi32>
    %17 = arith.extui %16 : vector<4x256xi1> to vector<4x256xi32>
    %18 = arith.sitofp %17 : vector<4x256xi32> to vector<4x256xf32>
    %19 = arith.mulf %4, %18 : vector<4x256xf32>
    %cst_7 = arith.constant dense<0.000000e+00> : vector<256xf32>
    %20 = vector.multi_reduction <add>, %19, %cst_7 [0] : vector<4x256xf32> to vector<256xf32>
    %21 = vector.shape_cast %20 : vector<256xf32> to vector<1x256xf32>
    %22 = arith.subf %21, %8 : vector<1x256xf32>
    %23 = math.log %13 : vector<1x256xf32>
    %24 = arith.subf %22, %23 : vector<1x256xf32>
    %25 = math.exp %24 : vector<1x256xf32>
    %cst_8 = arith.constant 1.000000e+00 : f32
    %26 = vector.broadcast %cst_8 : f32 to vector<1x256xf32>
    %27 = arith.subf %26, %25 : vector<1x256xf32>
    %cst_9 = arith.constant 0.000000e+00 : f32
    %28 = vector.broadcast %cst_9 : f32 to vector<1x256xf32>
    %29 = arith.maximumf %27, %28 : vector<1x256xf32>
    %cst_10 = arith.constant 1.000000e+00 : f32
    %30 = vector.broadcast %cst_10 : f32 to vector<1x256xf32>
    %31 = arith.mulf %30, %29 : vector<1x256xf32>
    %32 = arith.mulf %31, %29 : vector<1x256xf32>
    %33 = arith.mulf %32, %24 : vector<1x256xf32>
    %c255_i32 = arith.constant 255 : i32
    %34 = vector.broadcast %c255_i32 : i32 to vector<1x256xi32>
    %35 = arith.cmpi ne, %6, %34 : vector<1x256xi32>
    %c256_i32 = arith.constant 256 : i32
    %36 = arith.muli %arg1, %c256_i32 : i32
    %37 = tpu.iota {dimensions = array<i32: 1>} : vector<1x256xi32>
    %38 = vector.broadcast %36 : i32 to vector<1x256xi32>
    %39 = arith.addi %38, %37 : vector<1x256xi32>
    %c256_i32_11 = arith.constant 256 : i32
    %40 = vector.broadcast %c256_i32_11 : i32 to vector<1x256xi32>
    %41 = arith.cmpi slt, %39, %40 : vector<1x256xi32>
    %42 = arith.andi %35, %41 : vector<1x256xi1>
    %c0_12 = arith.constant 0 : index
    %c0_13 = arith.constant 0 : index
    %c0_14 = arith.constant 0 : index
    %43 = vector.load %arg4[%c0_12, %c0_13, %c0_14] : memref<1x8x256xf32, #tpu.memory_space<vmem>>, vector<1x1x256xf32>
    %44 = vector.shape_cast %43 : vector<1x1x256xf32> to vector<1x256xf32>
    %cst_15 = arith.constant 0.000000e+00 : f32
    %45 = vector.broadcast %cst_15 : f32 to vector<1x256xf32>
    %46 = arith.subf %45, %33 : vector<1x256xf32>
    %cst_16 = arith.constant 0.000000e+00 : f32
    %47 = vector.broadcast %cst_16 : f32 to vector<1x256xf32>
    %48 = arith.select %42, %46, %47 : vector<1x256xi1>, vector<1x256xf32>
    %49 = arith.addf %44, %48 : vector<1x256xf32>
    %c0_17 = arith.constant 0 : index
    %c0_18 = arith.constant 0 : index
    %c0_19 = arith.constant 0 : index
    %50 = vector.load %arg4[%c0_17, %c0_18, %c0_19] : memref<1x8x256xf32, #tpu.memory_space<vmem>>, vector<1x1x256xf32>
    %51 = vector.shape_cast %50 : vector<1x1x256xf32> to vector<1x256xf32>
    %52 = vector.shape_cast %49 : vector<1x256xf32> to vector<1x1x256xf32>
    tpu.vector_store %arg4[%c0_17, %c0_18, %c0_19], %52 {strides = array<i32>} : memref<1x8x256xf32, #tpu.memory_space<vmem>>, vector<1x1x256xf32>,
    %c0_20 = arith.constant 0 : index
    %c0_21 = arith.constant 0 : index
    %c0_22 = arith.constant 0 : index
    %53 = vector.load %arg5[%c0_20, %c0_21, %c0_22] : memref<1x8x256xf32, #tpu.memory_space<vmem>>, vector<1x1x256xf32>
    %54 = vector.shape_cast %53 : vector<1x1x256xf32> to vector<1x256xf32>
    %55 = arith.extui %42 : vector<1x256xi1> to vector<1x256xi32>
    %56 = arith.sitofp %55 : vector<1x256xi32> to vector<1x256xf32>
    %57 = arith.addf %54, %56 : vector<1x256xf32>
    %c0_23 = arith.constant 0 : index
    %c0_24 = arith.constant 0 : index
    %c0_25 = arith.constant 0 : index
    %58 = vector.load %arg5[%c0_23, %c0_24, %c0_25] : memref<1x8x256xf32, #tpu.memory_space<vmem>>, vector<1x1x256xf32>
    %59 = vector.shape_cast %58 : vector<1x1x256xf32> to vector<1x256xf32>
    %60 = vector.shape_cast %57 : vector<1x256xf32> to vector<1x1x256xf32>
    tpu.vector_store %arg5[%c0_23, %c0_24, %c0_25], %60 {strides = array<i32>} : memref<1x8x256xf32, #tpu.memory_space<vmem>>, vector<1x1x256xf32>,
    return
  }
  func.func @transform_0(%arg0: i32, %arg1: i32) -> (i32, i32, i32) {
    %c0_i32 = arith.constant 0 : i32
    %c0_i32_0 = arith.constant 0 : i32
    return %arg0, %c0_i32, %arg1 : i32, i32, i32
  }
  func.func @transform_1(%arg0: i32, %arg1: i32) -> (i32, i32, i32) {
    %c0_i32 = arith.constant 0 : i32
    %c0_i32_0 = arith.constant 0 : i32
    return %arg0, %c0_i32, %arg1 : i32, i32, i32
  }
  func.func @transform_2(%arg0: i32, %arg1: i32) -> (i32, i32, i32) {
    %c0_i32 = arith.constant 0 : i32
    %c0_i32_0 = arith.constant 0 : i32
    %c0_i32_1 = arith.constant 0 : i32
    return %arg0, %c0_i32, %c0_i32_0 : i32, i32, i32
  }
  func.func @transform_3(%arg0: i32, %arg1: i32) -> (i32, i32, i32) {
    %c0_i32 = arith.constant 0 : i32
    %c0_i32_0 = arith.constant 0 : i32
    %c0_i32_1 = arith.constant 0 : i32
    return %arg0, %c0_i32, %c0_i32_0 : i32, i32, i32
  }
}

</mosaic_0001>

<llo_original>
// kernel: tpu_custom_call.1
$region0: #{tpu_custom_call.1}
  #allocation0 [shape = 'u32[]', space=smem, size = 0x4, offset = 0x4, fixed_abs, tag = 'smem constant byte address 0x4 - core index']
  #allocation1 [shape = 'u32[144,128]{1,0:T(1,128)}', space=vmem, size = 0x12000, scoped, tag = 'internal scratch']
  %s0 = inlined_call_operand.hbm [shape: f32[2,4,256], index: 0, kind: input, shape index: {}]
  %s1 = inlined_call_operand.hbm [shape: s32[2,1,256], index: 1, kind: input, shape index: {}]
  %s2 = inlined_call_operand.hbm [shape: f32[2,8,256], index: 2, kind: output, shape index: {0}]
  %s3 = inlined_call_operand.hbm [shape: f32[2,8,256], index: 3, kind: output, shape index: {1}]
  %4 = xla_tuple %s2, %s3
  %s5 = sld [smem:[#allocation0]]
  $region61: #{tpu_custom_call.1} parent=0
    _
  %s7 = ssub.s32 1, %s5
  %s8 = scalar_select 0, %s7, %s5
  $region1: #{tpu_custom_call.1} parent=0
    #allocation2 [shape = 'u8[8192]{0}', space=vmem, size = 0x2000, scoped, tag = 'input window, operand 0']
    #allocation3 [shape = 's32[2]{0}', space=sflag, size = 0x8, scoped, tag = 'scoped memory for tpu_custom_call.1']
    #allocation4 [shape = 's32[2]{0}', space=sflag, size = 0x8, scoped, tag = 'scoped memory for tpu_custom_call.1']
    #allocation5 [shape = 'u8[2048]{0}', space=vmem, size = 0x800, scoped, tag = 'input window, operand 1']
    #allocation6 [shape = 's32[2]{0}', space=sflag, size = 0x8, scoped, tag = 'scoped memory for tpu_custom_call.1']
    #allocation7 [shape = 'u8[16384]{0}', space=vmem, size = 0x4000, scoped, tag = 'output window, operand 0']
    #allocation8 [shape = 'u8[16384]{0}', space=vmem, size = 0x4000, scoped, tag = 'output window, operand 1']
    #allocation9 [shape = 's32[2]{0}', space=sflag, size = 0x8, scoped, tag = 'scoped memory for tpu_custom_call.1']
    %9 = vsyncpa [#allocation3], 0
    %s10 = scalar_lea.sflag [#allocation3], 1
    %11 = vsyncpa %s10, 0
    %12 = vsyncpa [#allocation6], 0
    %s13 = scalar_lea.sflag [#allocation6], 1
    %14 = vsyncpa %s13, 0
    %15 = vsyncpa [#allocation4], 0
    %s16 = scalar_lea.sflag [#allocation4], 1
    %17 = vsyncpa %s16, 0
    %18 = vsyncpa [#allocation9], 0
    %s19 = scalar_lea.sflag [#allocation9], 1
    %20 = vsyncpa %s19, 0
    loop: start=0, step=1, limit=4
    $region2: #{tpu_custom_call.1} parent=1 // loop_pre_header
      _
    $region3: #{tpu_custom_call.1} parent=1 // loop_header
      %s22 = sphi 0, %s26
      %p23 = scmp.ge.s32.totalorder %s22, 4
      %s29 = sphi 0, %s41
      %s30 = sphi 0, %s37
      %s31 = sphi 0, %s29
      %s32 = sphi 0, %s30
      %s33 = sphi 0, %s31
      %s34 = sphi 0, %s32
      %s46 = sphi 0, %s48
      %s49 = sphi 0, %s46
      %s50 = sphi 0, %s49
      %s66 = sphi 0, %s50
      %s74 = sphi 0, %s76
      %s77 = sphi 0, %s74
      %s78 = sphi 0, %s77
      %s94 = sphi 0, %s78
      %s100 = sphi 0, %s102
      %s103 = sphi 0, %s100
      %s104 = sphi 0, %s103
      %s120 = sphi 0, %s104
      %s126 = sphi 0, %s128
      %s129 = sphi 0, %s126
      %s130 = sphi 0, %s129
      %s146 = sphi 0, %s130
    $region4: #{tpu_custom_call.1} parent=1 // loop_header_branch
      %25 = sbr.rel (%p23) target = $region8
    $region5: #{tpu_custom_call.1} parent=1 // loop_body
      %s27 = ssub.s32 %s22, 1
      %s28 = ssub.s32 %s22, 2
      %s35 = sadd.s32 1, %s30
      %p36 = scmp.ge.s32.totalorder %s35, 1
      %s37 = scalar_select %p36, 0, %s35
      %s38 = sadd.s32 1, %s29
      %s39 = scalar_select %p36, %s38, %s29
      %p40 = scmp.ge.s32.totalorder %s39, 2
      %s41 = scalar_select %p40, 0, %s39
      %s42 = ssub.s32 %s29, %s41
      %s43 = ssub.s32 %s30, %s37
      %s44 = sor.u32 %s42, %s43
      %p45 = scmp.eq.s32.totalorder %s44, 0
      %s47 = sadd.s32 %s46, 1
      %s48 = scalar_select %p45, %s46, %s47
      %p51 = pneg %p45
      %p52 = scmp.eq.s32.totalorder %s22, 1
      %p53 = por %p51, %p52
      %p54 = scmp.ne.s32.totalorder %s46, %s49
      %p55 = scmp.eq.s32.totalorder %s22, 0
      %p56 = por %p54, %p55
      %p57 = scmp.ne.s32.totalorder %s46, %s49
      %p58 = scmp.eq.s32.totalorder %s27, 1
      %p59 = por %p57, %p58
      %p60 = scmp.ne.s32.totalorder %s49, %s50
      %p61 = scmp.eq.s32.totalorder %s27, 0
      %p62 = por %p60, %p61
      %p63 = scmp.ne.s32.totalorder %s49, %s50
      %p64 = scmp.eq.s32.totalorder %s28, 1
      %p65 = por %p63, %p64
      %p67 = scmp.ne.s32.totalorder %s50, %s66
      %p68 = scmp.eq.s32.totalorder %s28, 0
      %p69 = por %p67, %p68
      %s70 = ssub.s32 %s29, %s41
      %s71 = ssub.s32 %s30, %s37
      %s72 = sor.u32 %s70, %s71
      %p73 = scmp.eq.s32.totalorder %s72, 0
      %s75 = sadd.s32 %s74, 1
      %s76 = scalar_select %p73, %s74, %s75
      %p79 = pneg %p73
      %p80 = scmp.eq.s32.totalorder %s22, 1
      %p81 = por %p79, %p80
      %p82 = scmp.ne.s32.totalorder %s74, %s77
      %p83 = scmp.eq.s32.totalorder %s22, 0
      %p84 = por %p82, %p83
      %p85 = scmp.ne.s32.totalorder %s74, %s77
      %p86 = scmp.eq.s32.totalorder %s27, 1
      %p87 = por %p85, %p86
      %p88 = scmp.ne.s32.totalorder %s77, %s78
      %p89 = scmp.eq.s32.totalorder %s27, 0
      %p90 = por %p88, %p89
      %p91 = scmp.ne.s32.totalorder %s77, %s78
      %p92 = scmp.eq.s32.totalorder %s28, 1
      %p93 = por %p91, %p92
      %p95 = scmp.ne.s32.totalorder %s78, %s94
      %p96 = scmp.eq.s32.totalorder %s28, 0
      %p97 = por %p95, %p96
      %s98 = ssub.s32 %s29, %s41
      %p99 = scmp.eq.s32.totalorder %s98, 0
      %s101 = sadd.s32 %s100, 1
      %s102 = scalar_select %p99, %s100, %s101
      %p105 = pneg %p99
      %p106 = scmp.eq.s32.totalorder %s22, 1
      %p107 = por %p105, %p106
      %p108 = scmp.ne.s32.totalorder %s100, %s103
      %p109 = scmp.eq.s32.totalorder %s22, 0
      %p110 = por %p108, %p109
      %p111 = scmp.ne.s32.totalorder %s100, %s103
      %p112 = scmp.eq.s32.totalorder %s27, 1
      %p113 = por %p111, %p112
      %p114 = scmp.ne.s32.totalorder %s103, %s104
      %p115 = scmp.eq.s32.totalorder %s27, 0
      %p116 = por %p114, %p115
      %p117 = scmp.ne.s32.totalorder %s103, %s104
      %p118 = scmp.eq.s32.totalorder %s28, 1
      %p119 = por %p117, %p118
      %p121 = scmp.ne.s32.totalorder %s104, %s120
      %p122 = scmp.eq.s32.totalorder %s28, 0
      %p123 = por %p121, %p122
      %s124 = ssub.s32 %s29, %s41
      %p125 = scmp.eq.s32.totalorder %s124, 0
      %s127 = sadd.s32 %s126, 1
      %s128 = scalar_select %p125, %s126, %s127
      %p131 = pneg %p125
      %p132 = scmp.eq.s32.totalorder %s22, 1
      %p133 = por %p131, %p132
      %p134 = scmp.ne.s32.totalorder %s126, %s129
      %p135 = scmp.eq.s32.totalorder %s22, 0
      %p136 = por %p134, %p135
      %p137 = scmp.ne.s32.totalorder %s126, %s129
      %p138 = scmp.eq.s32.totalorder %s27, 1
      %p139 = por %p137, %p138
      %p140 = scmp.ne.s32.totalorder %s129, %s130
      %p141 = scmp.eq.s32.totalorder %s27, 0
      %p142 = por %p140, %p141
      %p143 = scmp.ne.s32.totalorder %s129, %s130
      %p144 = scmp.eq.s32.totalorder %s28, 1
      %p145 = por %p143, %p144
      %p147 = scmp.ne.s32.totalorder %s130, %s146
      %p148 = scmp.eq.s32.totalorder %s28, 0
      %p149 = por %p147, %p148
      %p150 = scmp.le.s32.totalorder 1, %s22
      %p151 = scmp.lt.s32.totalorder %s22, 3
      %p152 = pnand %p150, %p151
      %p153 = pneg %p152
      // Predicated region
      $region9: #{tpu_custom_call.1} parent=5 // pred_check
        _
      $region10: #{tpu_custom_call.1} parent=5 // pred_check_branch
        %155 = sbr.rel (%p152) target = $region12
      $region11: #{tpu_custom_call.1} parent=5 // pred_region
        %s156 = ssub.s32 %s22, 1
      $region12: #{tpu_custom_call.1} parent=5 // pred_fallthru
        _
      %p157 = scmp.lt.s32.totalorder %s22, 2
      // Predicated region
      $region13: #{tpu_custom_call.1} parent=5 // pred_check
        %p158 = pneg %p157
      $region14: #{tpu_custom_call.1} parent=5 // pred_check_branch
        %160 = sbr.rel (%p158) target = $region16
      $region15: #{tpu_custom_call.1} parent=5 // pred_region
        // Predicated region
        $region17: #{tpu_custom_call.1} parent=15 // pred_check
          %p161 = pneg %p56
        $region18: #{tpu_custom_call.1} parent=15 // pred_check_branch
          %163 = sbr.rel (%p161) target = $region20
        $region19: #{tpu_custom_call.1} parent=15 // pred_region
          %s164 = sand.u32 %s46, 1
          %s165 = scalar_lea.sflag [#allocation3], %s164
          %s166 = sand.u32 %s46, 1
          %s167 = smul.addr %s166, 8
          %s168 = scalar_lea.vmem [#allocation2], %s167
          %s169 = smul.u32 2, %s30
          %s171 = ssub.s32 128, 128
          %172 = vsyncadd %s165, %s171
          %s173 = smul.addr %s29, 2
          %s174 = sadd.s32 %s169, %s173
          %s175 = smul.addr %s174, 64
          %s176 = scalar_lea.hbm %s0, %s175
          %s178 = sshll.u32 %s168, 4
          %s179 = int_to_ptr.vmem [resolvable:$true] %s178
          %181 = dma.hbm_to_vmem [thread:$0]  %s176, 128, %s179, %s165
        $region20: #{tpu_custom_call.1} parent=15 // pred_fallthru
          _
        // Predicated region
        $region21: #{tpu_custom_call.1} parent=15 // pred_check
          %p182 = pneg %p84
        $region22: #{tpu_custom_call.1} parent=15 // pred_check_branch
          %184 = sbr.rel (%p182) target = $region24
        $region23: #{tpu_custom_call.1} parent=15 // pred_region
          %s185 = sand.u32 %s74, 1
          %s186 = scalar_lea.sflag [#allocation6], %s185
          %s187 = sand.u32 %s74, 1
          %s188 = smul.addr %s187, 2
          %s189 = scalar_lea.vmem [#allocation5], %s188
          %s190 = smul.u32 2, %s30
          %s192 = ssub.s32 32, 32
          %193 = vsyncadd %s186, %s192
          %s194 = smul.addr %s29, 2
          %s195 = sadd.s32 %s190, %s194
          %s196 = smul.addr %s195, 16
          %s197 = scalar_lea.hbm %s1, %s196
          %s199 = sshll.u32 %s189, 4
          %s200 = int_to_ptr.vmem [resolvable:$true] %s199
          %202 = dma.hbm_to_vmem [thread:$0]  %s197, 32, %s200, %s186
        $region24: #{tpu_custom_call.1} parent=15 // pred_fallthru
          _
      $region16: #{tpu_custom_call.1} parent=5 // pred_fallthru
        _
      %p203 = scmp.le.s32.totalorder 1, %s22
      %p204 = scmp.lt.s32.totalorder %s22, 3
      %p205 = pnand %p203, %p204
      %p206 = pneg %p205
      // Predicated region
      $region25: #{tpu_custom_call.1} parent=5 // pred_check
        _
      $region26: #{tpu_custom_call.1} parent=5 // pred_check_branch
        %208 = sbr.rel (%p205) target = $region28
      $region27: #{tpu_custom_call.1} parent=5 // pred_region
        %s209 = ssub.s32 %s22, 1
        %s210 = sand.u32 %s49, 1
        %s211 = scalar_lea.sflag [#allocation3], %s210
        %s212 = sand.u32 %s49, 1
        %s213 = smul.addr %s212, 8
        %s214 = scalar_lea.vmem [#allocation2], %s213
        // Predicated region
        $region29: #{tpu_custom_call.1} parent=27 // pred_check
          %p215 = pneg %p62
        $region30: #{tpu_custom_call.1} parent=27 // pred_check_branch
          %217 = sbr.rel (%p215) target = $region32
        $region31: #{tpu_custom_call.1} parent=27 // pred_region
          %218 = dma.done %s211, 128
        $region32: #{tpu_custom_call.1} parent=27 // pred_fallthru
          _
        %s219 = sand.u32 %s77, 1
        %s220 = scalar_lea.sflag [#allocation6], %s219
        %s221 = sand.u32 %s77, 1
        %s222 = smul.addr %s221, 2
        %s223 = scalar_lea.vmem [#allocation5], %s222
        // Predicated region
        $region33: #{tpu_custom_call.1} parent=27 // pred_check
          %p224 = pneg %p90
        $region34: #{tpu_custom_call.1} parent=27 // pred_check_branch
          %226 = sbr.rel (%p224) target = $region36
        $region35: #{tpu_custom_call.1} parent=27 // pred_region
          %227 = dma.done %s220, 32
        $region36: #{tpu_custom_call.1} parent=27 // pred_fallthru
          _
        %s228 = sand.u32 %s49, 1
        %s229 = scalar_lea.sflag [#allocation3], %s228
        %s230 = sand.u32 %s49, 1
        %s231 = smul.addr %s230, 8
        %s232 = scalar_lea.vmem [#allocation2], %s231
        %p233 = pneg %p62
        %p234 = pneg %p59
        %s235 = sand.u32 %s77, 1
        %s236 = scalar_lea.sflag [#allocation6], %s235
        %s237 = sand.u32 %s77, 1
        %s238 = smul.addr %s237, 2
        %s239 = scalar_lea.vmem [#allocation5], %s238
        %p240 = pneg %p90
        %p241 = pneg %p87
        %p242 = pneg %p116
        %p243 = pneg %p113
        %s244 = sand.u32 %s103, 1
        %s245 = scalar_lea.sflag [#allocation4], %s244
        %s246 = sand.u32 %s103, 1
        %s247 = smul.addr %s246, 16
        %s248 = scalar_lea.vmem [#allocation7], %s247
        %p249 = pneg %p142
        %p250 = pneg %p139
        %s251 = sand.u32 %s129, 1
        %s252 = scalar_lea.sflag [#allocation9], %s251
        %s253 = sand.u32 %s129, 1
        %s254 = smul.addr %s253, 16
        %s255 = scalar_lea.vmem [#allocation8], %s254
        %s256 = smul.u32 2, %s32
        %s257 = smul.u32 2, %s32
        %p258 = scmp.eq.s32.totalorder %s32, 0
        // Predicated region
        $region37: #{tpu_custom_call.1} parent=27 // pred_check
          %p259 = pneg %p258
        $region38: #{tpu_custom_call.1} parent=27 // pred_check_branch
          %261 = sbr.rel (%p259) target = $region40
        $region39: #{tpu_custom_call.1} parent=27 // pred_region
          %262 = vst [vmem:[%s248] sm:$0xff] 0.0
          %263 = vst [vmem:[%s248 + $0x8] sm:$0xff] 0.0
          %264 = vst [vmem:[%s255] sm:$0xff] 0.0
          %265 = vst [vmem:[%s255 + $0x8] sm:$0xff] 0.0
        $region40: #{tpu_custom_call.1} parent=27 // pred_fallthru
          _
        %v266 = vld [vmem:[%s214] sm:$0xff]
        %v267 = vld [vmem:[%s223] sm:$0x3]
        %v269 = vcombine.high %v266, %v266
        %vm271 = vcmask 1043456
        %v272 = vsel %vm271, %v266, -inf
        %v273 = vrot.slane %v272, 4
        %v274 = vmax.f32 %v272, %v273
        %v275 = vrot.slane %v274, 2
        %v276 = vmax.f32 %v274, %v275
        %v277 = vrot.slane %v276, 1
        %v278 = vmax.f32 %v276, %v277
        %v279 = vsel %vm271, %v269, -inf
        %v280 = vrot.slane %v279, 4
        %v281 = vmax.f32 %v279, %v280
        %v282 = vrot.slane %v281, 2
        %v283 = vmax.f32 %v281, %v282
        %v284 = vrot.slane %v283, 1
        %v285 = vmax.f32 %v283, %v284
        %v288 = vcombine.low %v278, %v285
        %v290 = vsub.f32 %v266, %v288
        %v291 = vmul.f32 %v290, 1.442695
        %v292 = vpow.pop %v291
        %v294 = vcombine.high %v292, %v292
        %v296 = vsel %vm271, %v292, 0.0
        %v297 = vrot.slane %v296, 4
        %v298 = vadd.f32 %v296, %v297
        %v299 = vrot.slane %v298, 2
        %v300 = vadd.f32 %v298, %v299
        %v301 = vrot.slane %v300, 1
        %v302 = vadd.f32 %v300, %v301
        %v303 = vsel %vm271, %v294, 0.0
        %v304 = vrot.slane %v303, 4
        %v305 = vadd.f32 %v303, %v304
        %v306 = vrot.slane %v305, 2
        %v307 = vadd.f32 %v305, %v306
        %v308 = vrot.slane %v307, 1
        %v309 = vadd.f32 %v307, %v308
        %v310 = vlaneseq
        %v311 = vshrl.u32 %v310, 7
        %v312 = vlaneseq
        %v313 = vshrl.u32 %v312, 7
        %v314 = vsub.s32 0, %v313
        %v315 = vrot.slane %v267, %v314
        %v316 = vlaneseq
        %v317 = vshrl.u32 %v316, 7
        %v318 = vsub.s32 1, %v317
        %v319 = vrot.slane %v267, %v318
        %vm320 = vcmp.eq.s32.totalorder %v311, %v315
        %vm321 = vcmp.eq.s32.totalorder %v311, %v319
        %v322 = vsel %vm320, 1, 0
        %v323 = vsel %vm321, 1, 0
        %v324 = vcvt.s32.f32 %v322
        %v325 = vcvt.s32.f32 %v323
        %v328 = vcombine.low %v324, %v325
        %v330 = vmul.f32 %v266, %v328
        %v332 = vcombine.high %v330, %v330
        %v334 = vsel %vm271, %v330, 0.0
        %v335 = vrot.slane %v334, 4
        %v336 = vadd.f32 %v334, %v335
        %v337 = vrot.slane %v336, 2
        %v338 = vadd.f32 %v336, %v337
        %v339 = vrot.slane %v338, 1
        %v340 = vadd.f32 %v338, %v339
        %v341 = vsel %vm271, %v332, 0.0
        %v342 = vrot.slane %v341, 4
        %v343 = vadd.f32 %v341, %v342
        %v344 = vrot.slane %v343, 2
        %v345 = vadd.f32 %v343, %v344
        %v346 = vrot.slane %v345, 1
        %v347 = vadd.f32 %v345, %v346
        %v348 = vsub.f32 %v340, %v278
        %v349 = vsub.f32 %v347, %v285
        %v350 = vlog2.pop %v302
        %v351 = vmul.f32 %v350, 0.6931472
        %v352 = vlog2.pop %v309
        %v353 = vmul.f32 %v352, 0.6931472
        %v354 = vsub.f32 %v348, %v351
        %v355 = vsub.f32 %v349, %v353
        %v356 = vmul.f32 %v354, 1.442695
        %v357 = vpow.pop %v356
        %v358 = vmul.f32 %v355, 1.442695
        %v359 = vpow.pop %v358
        %v360 = vsub.f32 1.0, %v357
        %v361 = vsub.f32 1.0, %v359
        %v362 = vmax.f32 %v360, 0.0
        %v363 = vmax.f32 %v361, 0.0
        %v364 = vmul.f32 %v362, %v362
        %v365 = vmul.f32 %v363, %v363
        %v366 = vmul.f32 %v364, %v354
        %v367 = vmul.f32 %v365, %v355
        %vm368 = vcmp.ne.s32.totalorder %v267, 255
        %s369 = smul.u32 %s32, 256
        %v370 = vlaneseq
        %v371 = vand.u32 %v370, 127
        %v372 = vadd.s32 %v371, 128
        %v373 = vstv %s369
        %v374 = vadd.s32 %v373, %v371
        %v375 = vadd.s32 %v373, %v372
        %vm376 = vcmp.lt.s32.totalorder %v374, 256
        %vm377 = vcmp.lt.s32.totalorder %v375, 256
        %v378 = vsel %vm376, 1, 0
        %v379 = vsel %vm377, 1, 0
        %v380 = vcombine.low %v378, %v379
        %v382 = vunpack.c.l.s4 1966171168
        %v383 = vunpack.c.0.s8 %v382
        %v384 = vlaneseq
        %v385 = vshrl.u32 %v384, 7
        %v386 = vsub.s32 %v383, %v385
        %v387 = vrot.slane %v380, %v386
        %v389 = vunpack.c.l.s4 1966171168
        %v390 = vunpack.c.0.s8 %v389
        %v391 = vlaneseq
        %v392 = vshrl.u32 %v391, 7
        %v393 = vsub.s32 %v390, %v392
        %v394 = vrot.slane %v387, %v393
        %vm395 = vcmp.ne.s32.totalorder %v394, 0
        %vm396 = vmand %vm368, %vm395
        %v397 = vld [vmem:[%s248] ss:$8 sm:$0x3]
        %v398 = vsub.f32 0.0, %v366
        %v399 = vsub.f32 0.0, %v367
        %v402 = vcombine.low %v398, %v399
        %v404 = vunpack.c.l.s4 1966171168
        %v405 = vunpack.c.0.s8 %v404
        %v406 = vlaneseq
        %v407 = vshrl.u32 %v406, 7
        %v408 = vsub.s32 %v405, %v407
        %v409 = vrot.slane %v402, %v408
        %v411 = vunpack.c.l.s4 1966171168
        %v412 = vunpack.c.0.s8 %v411
        %v413 = vlaneseq
        %v414 = vshrl.u32 %v413, 7
        %v415 = vsub.s32 %v412, %v414
        %v416 = vrot.slane %v409, %v415
        %v418 = vsel %vm396, %v416, 0.0
        %v419 = vadd.f32 %v397, %v418
        %v420 = vlaneseq
        %vm421 = vcmp.ge.s32.totalorder %v420, 0
        %vm422 = vcmp.lt.s32.totalorder %v420, 256
        %vm423 = vmand %vm421, %vm422
        %424 = vst.msk [vmem:[%s248] ss:$8 sm:$0x3] %vm423, %v419
        %425 = vst.msk [vmem:[%s248] ss:$8 sm:$0x0] %vm423, %v419
        %v426 = vld [vmem:[%s255] ss:$8 sm:$0x3]
        %v427 = vsel %vm396, 1, 0
        %v428 = vcvt.s32.f32 %v427
        %v429 = vadd.f32 %v426, %v428
        %430 = vst.msk [vmem:[%s255] ss:$8 sm:$0x3] %vm423, %v429
        %431 = vst.msk [vmem:[%s255] ss:$8 sm:$0x0] %vm423, %v429
        %s432 = sand.u32 %s103, 1
        %s433 = scalar_lea.sflag [#allocation4], %s432
        %s434 = sand.u32 %s103, 1
        %s435 = smul.addr %s434, 16
        %s436 = scalar_lea.vmem [#allocation7], %s435
        %s437 = sand.u32 %s129, 1
        %s438 = scalar_lea.sflag [#allocation9], %s437
        %s439 = sand.u32 %s129, 1
        %s440 = smul.addr %s439, 16
        %s441 = scalar_lea.vmem [#allocation8], %s440
        // Predicated region
        $region41: #{tpu_custom_call.1} parent=27 // pred_check
          %p442 = pneg %p113
        $region42: #{tpu_custom_call.1} parent=27 // pred_check_branch
          %444 = sbr.rel (%p442) target = $region44
        $region43: #{tpu_custom_call.1} parent=27 // pred_region
          %s446 = ssub.s32 256, 256
          %447 = vsyncadd %s433, %s446
          %s448 = smul.addr %s31, 2
          %s449 = smul.addr %s448, 128
          %s450 = scalar_lea.hbm %s2, %s449
          %s452 = sshll.u32 %s436, 4
          %s453 = int_to_ptr.vmem [resolvable:$true] %s452
          %455 = dma.vmem_to_hbm [thread:$0]  %s453, 256, %s450, %s433
        $region44: #{tpu_custom_call.1} parent=27 // pred_fallthru
          _
        // Predicated region
        $region45: #{tpu_custom_call.1} parent=27 // pred_check
          %p456 = pneg %p139
        $region46: #{tpu_custom_call.1} parent=27 // pred_check_branch
          %458 = sbr.rel (%p456) target = $region48
        $region47: #{tpu_custom_call.1} parent=27 // pred_region
          %s460 = ssub.s32 256, 256
          %461 = vsyncadd %s438, %s460
          %s462 = smul.addr %s31, 2
          %s463 = smul.addr %s462, 128
          %s464 = scalar_lea.hbm %s3, %s463
          %s466 = sshll.u32 %s441, 4
          %s467 = int_to_ptr.vmem [resolvable:$true] %s466
          %469 = dma.vmem_to_hbm [thread:$0]  %s467, 256, %s464, %s438
        $region48: #{tpu_custom_call.1} parent=27 // pred_fallthru
          _
      $region28: #{tpu_custom_call.1} parent=5 // pred_fallthru
        _
      %p470 = scmp.le.s32.totalorder 2, %s22
      // Predicated region
      $region49: #{tpu_custom_call.1} parent=5 // pred_check
        %p471 = pneg %p470
      $region50: #{tpu_custom_call.1} parent=5 // pred_check_branch
        %473 = sbr.rel (%p471) target = $region52
      $region51: #{tpu_custom_call.1} parent=5 // pred_region
        %s474 = ssub.s32 %s22, 2
        // Predicated region
        $region53: #{tpu_custom_call.1} parent=51 // pred_check
          %p475 = pneg %p119
        $region54: #{tpu_custom_call.1} parent=51 // pred_check_branch
          %477 = sbr.rel (%p475) target = $region56
        $region55: #{tpu_custom_call.1} parent=51 // pred_region
          %s478 = sand.u32 %s104, 1
          %s479 = scalar_lea.sflag [#allocation4], %s478
          %s480 = sand.u32 %s104, 1
          %s481 = smul.addr %s480, 16
          %s482 = scalar_lea.vmem [#allocation7], %s481
          %483 = dma.done %s479, 256
        $region56: #{tpu_custom_call.1} parent=51 // pred_fallthru
          _
        // Predicated region
        $region57: #{tpu_custom_call.1} parent=51 // pred_check
          %p484 = pneg %p145
        $region58: #{tpu_custom_call.1} parent=51 // pred_check_branch
          %486 = sbr.rel (%p484) target = $region60
        $region59: #{tpu_custom_call.1} parent=51 // pred_region
          %s487 = sand.u32 %s130, 1
          %s488 = scalar_lea.sflag [#allocation9], %s487
          %s489 = sand.u32 %s130, 1
          %s490 = smul.addr %s489, 16
          %s491 = scalar_lea.vmem [#allocation8], %s490
          %492 = dma.done %s488, 256
        $region60: #{tpu_custom_call.1} parent=51 // pred_fallthru
          _
      $region52: #{tpu_custom_call.1} parent=5 // pred_fallthru
        _
    $region6: #{tpu_custom_call.1} parent=1 // loop_footer
      %s26 = sadd.s32 1, %s22
    $region7: #{tpu_custom_call.1} parent=1 // loop_footer_branch
      %21 = sbr.rel target = $region3
    $region8: #{tpu_custom_call.1} parent=1 // loop_exit
      _
    %493 = vsyncpa [#allocation3], 1
    %s494 = scalar_lea.sflag [#allocation3], 1
    %495 = vsyncpa %s494, 1
    %496 = vsyncpa [#allocation6], 1
    %s497 = scalar_lea.sflag [#allocation6], 1
    %498 = vsyncpa %s497, 1
    %499 = vsyncpa [#allocation4], 1
    %s500 = scalar_lea.sflag [#allocation4], 1
    %501 = vsyncpa %s500, 1
    %502 = vsyncpa [#allocation9], 1
    %s503 = scalar_lea.sflag [#allocation9], 1
    %504 = vsyncpa %s503, 1

</llo_original>
